<compile_context>
chip_gen: v5e
topology: v5e:2x2
jax: 0.10.0
libtpu: 0.0.40
codegen_flags: <defaults>
</compile_context>

<pallas_src>
import functools

import jax
import jax.numpy as jnp
from jax import lax
from jax.experimental import pallas as pl
from jax.experimental.pallas import tpu as pltpu


# --------------------------------- kernel ------------------------------------

def _ce_label_smooth_kernel(eps, num_cls, n_total, block_n,
                            logits_ref, targets_ref, loss_ref, acc_ref):
    i = pl.program_id(0)

    @pl.when(i == 0)
    def _():
        acc_ref[0, 0] = 0.0

    x = logits_ref[...].astype(jnp.float32)           # (block_n, C)
    tgt = targets_ref[...]                            # (block_n, 1) int32

    # numerically-stable log_softmax along the class (lane) axis
    m = jnp.max(x, axis=-1, keepdims=True)
    shifted = x - m
    lse = jnp.log(jnp.sum(jnp.exp(shifted), axis=-1, keepdims=True))
    log_prob = shifted - lse                          # (block_n, C)

    # smoothed one-hot labels built in-register (replaces torch scatter_)
    col = lax.broadcasted_iota(jnp.int32, x.shape, 1)
    onehot = (col == tgt).astype(jnp.float32)
    off_val = eps / (num_cls - 1)
    smooth = off_val + ((1.0 - eps) - off_val) * onehot

    # mask rows that are only padding (when N was padded up to block_n multiple)
    row = lax.broadcasted_iota(jnp.int32, x.shape, 0) + i * block_n
    valid = (row < n_total).astype(jnp.float32)

    acc_ref[0, 0] += -jnp.sum(log_prob * smooth * valid)

    @pl.when(i == pl.num_programs(0) - 1)
    def _():
        loss_ref[0, 0] = acc_ref[0, 0] / n_total


# ------------------------------- wrapper --------------------------------------

def cross_entropy_label_smooth_pallas(outputs, targets, num_classes=10, epsilon=0.1):
    """outputs: (N, num_classes) float, targets: (N,) int -> scalar loss."""
    n, c = outputs.shape
    assert c == num_classes

    # choose a row tile; pad N up to a multiple of it (padded rows are masked
    # out inside the kernel, so padding values are irrelevant but kept finite)
    block_n = n if n <= 256 else 256
    n_pad = pl.cdiv(n, block_n) * block_n
    if n_pad != n:
        outputs = jnp.pad(outputs, ((0, n_pad - n), (0, 0)))
        targets = jnp.pad(targets, ((0, n_pad - n),))

    targets2d = targets.astype(jnp.int32).reshape(n_pad, 1)

    kernel = functools.partial(
        _ce_label_smooth_kernel,
        float(epsilon), int(num_classes), int(n), int(block_n))

    grid_spec = pltpu.PrefetchScalarGridSpec(
        num_scalar_prefetch=0,
        grid=(n_pad // block_n,),
        in_specs=[
            pl.BlockSpec((block_n, c), lambda i: (i, 0)),
            pl.BlockSpec((block_n, 1), lambda i: (i, 0)),
        ],
        out_specs=pl.BlockSpec(memory_space=pltpu.MemorySpace.SMEM),
        scratch_shapes=[pltpu.SMEM((1, 1), jnp.float32)],
    )

    loss = pl.pallas_call(
        kernel,
        out_shape=jax.ShapeDtypeStruct((1, 1), jnp.float32),
        grid_spec=grid_spec,
        compiler_params=pltpu.CompilerParams(
            dimension_semantics=("arbitrary",)),
    )(outputs.astype(jnp.float32), targets2d)
    return loss[0, 0]


# ---------------------------- pure-JAX reference -------------------------------

def reference_loss(outputs, targets, num_classes=10, epsilon=0.1):
    n = targets.shape[0]
    off = epsilon / (num_classes - 1)
    onehot = jax.nn.one_hot(targets, num_classes, dtype=jnp.float32)
    smooth = off + ((1.0 - epsilon) - off) * onehot
    log_prob = jax.nn.log_softmax(outputs.astype(jnp.float32), axis=1)
    return -jnp.sum(log_prob * smooth) / n


# ----------------------------------- main --------------------------------------

if __name__ == "__main__":
    num_classes = 10
    epsilon = 0.1
    n = 8                                    # small batch

    key = jax.random.PRNGKey(0)
    k_out, k_tgt = jax.random.split(key)
    outputs = jax.random.normal(k_out, (n, num_classes), jnp.float32)
    targets = jax.random.randint(k_tgt, (n,), 0, num_classes, jnp.int32)

    loss = cross_entropy_label_smooth_pallas(outputs, targets, num_classes, epsilon)
    loss = jax.block_until_ready(loss)

    ref = reference_loss(outputs, targets, num_classes, epsilon)
    assert loss.shape == ()
    assert jnp.isfinite(loss)
    assert jnp.abs(loss - ref) < 1e-5, (loss, ref)

    # also exercise a padded / multi-step grid path
    n2 = 300
    k_out2, k_tgt2 = jax.random.split(jax.random.PRNGKey(1))
    outputs2 = jax.random.normal(k_out2, (n2, num_classes), jnp.float32)
    targets2 = jax.random.randint(k_tgt2, (n2,), 0, num_classes, jnp.int32)
    loss2 = jax.block_until_ready(
        cross_entropy_label_smooth_pallas(outputs2, targets2, num_classes, epsilon))
    ref2 = reference_loss(outputs2, targets2, num_classes, epsilon)
    assert jnp.abs(loss2 - ref2) < 1e-5, (loss2, ref2)

    print("KERNEL_OK")
</pallas_src>

<mosaic_0001>
module attributes {stable_mosaic.version = 11 : i64} {
  func.func @_ce_label_smooth_kernel(%arg0: i32, %arg1: memref<8x10xf32, #tpu.memory_space<vmem>>, %arg2: memref<8x1xi32, #tpu.memory_space<vmem>>, %arg3: memref<1x1xf32, #tpu.memory_space<smem>>, %arg4: memref<1x1xf32, #tpu.memory_space<smem>>) attributes {dimension_semantics = [#tpu.dimension_semantics<arbitrary>], iteration_bounds = array<i64: 1>, scalar_prefetch = 0 : i64, scratch_operands = 1 : i64, tpu.core_type = #tpu.core_type<tc>, window_params = [{transform_indices = @transform_0, window_bounds = array<i64: 8, 10>}, {transform_indices = @transform_1, window_bounds = array<i64: 8, 1>}, {transform_indices = @transform_2, window_bounds = array<i64: 1, 1>}]} {
    %c0_i32 = arith.constant 0 : i32
    %0 = arith.cmpi eq, %arg0, %c0_i32 : i32
    %1 = arith.extui %0 : i1 to i32
    %c0_i32_0 = arith.constant 0 : i32
    %2 = arith.cmpi ne, %1, %c0_i32_0 : i32
    scf.if %2 {
      %cst_16 = arith.constant 0.000000e+00 : f32
      %c0_17 = arith.constant 0 : index
      %c0_18 = arith.constant 0 : index
      %45 = memref.load %arg4[%c0_17, %c0_18] : memref<1x1xf32, #tpu.memory_space<smem>>
      memref.store %cst_16, %arg4[%c0_17, %c0_18] : memref<1x1xf32, #tpu.memory_space<smem>>
    } else {
    }
    %c0 = arith.constant 0 : index
    %c0_1 = arith.constant 0 : index
    %3 = vector.load %arg1[%c0, %c0_1] : memref<8x10xf32, #tpu.memory_space<vmem>>, vector<8x10xf32>
    %c0_2 = arith.constant 0 : index
    %c0_3 = arith.constant 0 : index
    %4 = vector.load %arg2[%c0_2, %c0_3] : memref<8x1xi32, #tpu.memory_space<vmem>>, vector<8x1xi32>
    %cst = arith.constant dense<0xFF800000> : vector<8xf32>
    %5 = vector.multi_reduction <maximumf>, %3, %cst [1] : vector<8x10xf32> to vector<8xf32>
    %6 = vector.shape_cast %5 : vector<8xf32> to vector<8x1xf32>
    %7 = vector.broadcast %6 : vector<8x1xf32> to vector<8x10xf32>
    %8 = arith.subf %3, %7 : vector<8x10xf32>
    %9 = math.exp %8 : vector<8x10xf32>
    %cst_4 = arith.constant dense<0.000000e+00> : vector<8xf32>
    %10 = vector.multi_reduction <add>, %9, %cst_4 [1] : vector<8x10xf32> to vector<8xf32>
    %11 = vector.shape_cast %10 : vector<8xf32> to vector<8x1xf32>
    %12 = math.log %11 : vector<8x1xf32>
    %13 = vector.broadcast %12 : vector<8x1xf32> to vector<8x10xf32>
    %14 = arith.subf %8, %13 : vector<8x10xf32>
    %15 = tpu.iota {dimensions = array<i32: 1>} : vector<8x10xi32>
    %16 = vector.broadcast %4 : vector<8x1xi32> to vector<8x10xi32>
    %17 = arith.cmpi eq, %15, %16 : vector<8x10xi32>
    %18 = arith.extui %17 : vector<8x10xi1> to vector<8x10xi32>
    %19 = arith.sitofp %18 : vector<8x10xi32> to vector<8x10xf32>
    %cst_5 = arith.constant 0.888888895 : f32
    %20 = vector.broadcast %cst_5 : f32 to vector<8x10xf32>
    %21 = arith.mulf %20, %19 : vector<8x10xf32>
    %cst_6 = arith.constant 0.0111111114 : f32
    %22 = vector.broadcast %cst_6 : f32 to vector<8x10xf32>
    %23 = arith.addf %22, %21 : vector<8x10xf32>
    %24 = tpu.iota {dimensions = array<i32: 0>} : vector<8x10xi32>
    %c8_i32 = arith.constant 8 : i32
    %25 = arith.muli %arg0, %c8_i32 : i32
    %26 = vector.broadcast %25 : i32 to vector<8x10xi32>
    %27 = arith.addi %24, %26 : vector<8x10xi32>
    %c8_i32_7 = arith.constant 8 : i32
    %28 = vector.broadcast %c8_i32_7 : i32 to vector<8x10xi32>
    %29 = arith.cmpi slt, %27, %28 : vector<8x10xi32>
    %30 = arith.extui %29 : vector<8x10xi1> to vector<8x10xi32>
    %31 = arith.sitofp %30 : vector<8x10xi32> to vector<8x10xf32>
    %c0_8 = arith.constant 0 : index
    %c0_9 = arith.constant 0 : index
    %32 = memref.load %arg4[%c0_8, %c0_9] : memref<1x1xf32, #tpu.memory_space<smem>>
    %33 = arith.mulf %14, %23 : vector<8x10xf32>
    %34 = arith.mulf %33, %31 : vector<8x10xf32>
    %35 = vector.shape_cast %34 : vector<8x10xf32> to vector<1x8x10xf32>
    %cst_10 = arith.constant dense<0.000000e+00> : vector<1xf32>
    %36 = vector.multi_reduction <add>, %35, %cst_10 [1, 2] : vector<1x8x10xf32> to vector<1xf32>
    %37 = vector.shape_cast %36 : vector<1xf32> to vector<1x1x1xf32>
    %38 = vector.extract %37[0, 0, 0] : f32 from vector<1x1x1xf32>
    %cst_11 = arith.constant 0.000000e+00 : f32
    %39 = arith.subf %cst_11, %38 : f32
    %40 = arith.addf %32, %39 : f32
    %c0_12 = arith.constant 0 : index
    %c0_13 = arith.constant 0 : index
    %41 = memref.load %arg4[%c0_12, %c0_13] : memref<1x1xf32, #tpu.memory_space<smem>>
    memref.store %40, %arg4[%c0_12, %c0_13] : memref<1x1xf32, #tpu.memory_space<smem>>
    %c0_i32_14 = arith.constant 0 : i32
    %42 = arith.cmpi eq, %arg0, %c0_i32_14 : i32
    %43 = arith.extui %42 : i1 to i32
    %c0_i32_15 = arith.constant 0 : i32
    %44 = arith.cmpi ne, %43, %c0_i32_15 : i32
    scf.if %44 {
      %c0_16 = arith.constant 0 : index
      %c0_17 = arith.constant 0 : index
      %45 = memref.load %arg4[%c0_16, %c0_17] : memref<1x1xf32, #tpu.memory_space<smem>>
      %cst_18 = arith.constant 8.000000e+00 : f32
      %46 = arith.divf %45, %cst_18 : f32
      %c0_19 = arith.constant 0 : index
      %c0_20 = arith.constant 0 : index
      %47 = memref.load %arg3[%c0_19, %c0_20] : memref<1x1xf32, #tpu.memory_space<smem>>
      memref.store %46, %arg3[%c0_19, %c0_20] : memref<1x1xf32, #tpu.memory_space<smem>>
    } else {
    }
    return
  }
  func.func @transform_0(%arg0: i32) -> (i32, i32) {
    %c0_i32 = arith.constant 0 : i32
    %c0_i32_0 = arith.constant 0 : i32
    return %arg0, %c0_i32 : i32, i32
  }
  func.func @transform_1(%arg0: i32) -> (i32, i32) {
    %c0_i32 = arith.constant 0 : i32
    %c0_i32_0 = arith.constant 0 : i32
    return %arg0, %c0_i32 : i32, i32
  }
  func.func @transform_2(%arg0: i32) -> (i32, i32) {
    %c0_i32 = arith.constant 0 : i32
    %c0_i32_0 = arith.constant 0 : i32
    %c0_i32_1 = arith.constant 0 : i32
    return %c0_i32, %c0_i32_0 : i32, i32
  }
}

</mosaic_0001>

<llo_original>
// kernel: tpu_custom_call.1
$region0: #{tpu_custom_call.1}
  #allocation0 [shape = 'u32[]', space=smem, size = 0x4, offset = 0x4, fixed_abs, tag = 'smem constant byte address 0x4 - core index']
  #allocation1 [shape = 'u32[72,128]{1,0:T(1,128)}', space=vmem, size = 0x9000, scoped, tag = 'internal scratch']
  #allocation2 [shape = 'f32[1,1]{1,0:T(1,128)}', space=smem, size = 0x200, scoped, tag = 'scratch operand']
  %s0 = inlined_call_operand.vmem [shape: f32[8,10], index: 0, kind: input, shape index: {}]
  %s1 = inlined_call_operand.vmem [shape: s32[8,1], index: 1, kind: input, shape index: {}]
  %s2 = inlined_call_operand.hbm [shape: f32[1,1], index: 2, kind: output, shape index: {}]
  %s3 = sld [smem:[#allocation0]]
  $region26: #{tpu_custom_call.1} parent=0
    _
  %s5 = ssub.s32 1, %s3
  %s6 = scalar_select 0, %s5, %s3
  $region1: #{tpu_custom_call.1} parent=0
    #allocation3 [shape = 'u8[512]{0}', space=smem, size = 0x200, scoped, tag = 'output window, operand 0, single buffered']
    #allocation4 [shape = 's32[1]{0}', space=sflag, size = 0x4, scoped, tag = 'scoped memory for tpu_custom_call.1']
    %7 = vsyncpa [#allocation4], 0
    // Predicated region
    $region2: #{tpu_custom_call.1} parent=1 // pred_check
      _
    $region3: #{tpu_custom_call.1} parent=1 // pred_check_branch
      %9 = sbr.rel (0) target = $region5
    $region4: #{tpu_custom_call.1} parent=1 // pred_region
      _
    $region5: #{tpu_custom_call.1} parent=1 // pred_fallthru
      _
    // Predicated region
    $region6: #{tpu_custom_call.1} parent=1 // pred_check
      _
    $region7: #{tpu_custom_call.1} parent=1 // pred_check_branch
      %11 = sbr.rel (0) target = $region9
    $region8: #{tpu_custom_call.1} parent=1 // pred_region
      _
    $region9: #{tpu_custom_call.1} parent=1 // pred_fallthru
      _
    %p12 = scmp.eq.s32.totalorder 0, 0
    // Predicated region
    $region10: #{tpu_custom_call.1} parent=1 // pred_check
      %p13 = pneg %p12
    $region11: #{tpu_custom_call.1} parent=1 // pred_check_branch
      %15 = sbr.rel (%p13) target = $region13
    $region12: #{tpu_custom_call.1} parent=1 // pred_region
      %s16 = scalar_lea.smem [#allocation2], 0
      %17 = sst [smem:[%s16]] 0.0
    $region13: #{tpu_custom_call.1} parent=1 // pred_fallthru
      _
    %v18 = vld [vmem:[%s0] sm:$0xff]
    %v19 = vld [vmem:[%s1] sm:$0xff]
    %vm20 = vcmask 80896
    %v21 = vsel %vm20, %v18, -inf
    %22 = vmax.xlane.f32.xlu0 %v21
    %v23 = vpop.xlane.xlu0 %22
    %v24 = vsub.f32 %v18, %v23
    %v25 = vmul.f32 %v24, 1.442695
    %v26 = vpow.pop %v25
    %v27 = vsel %vm20, %v26, 0.0
    %28 = vadd.xlane.f32.xlu0 %v27
    %v29 = vpop.xlane.xlu0 %28
    %v30 = vlog2.pop %v29
    %v31 = vmul.f32 %v30, 0.6931472
    %v32 = vsub.f32 %v24, %v31
    %v33 = vlaneseq
    %v34 = vand.u32 %v33, 127
    %35 = vset.pattern.permute.xlu0 0
    %36 = vperm.xlu0 %35, %v19
    %v37 = vpop.permute.xlu0 %36
    %vm38 = vcmp.eq.s32.totalorder %v34, %v37
    %v39 = vsel %vm38, 1, 0
    %v40 = vcvt.s32.f32 %v39
    %v41 = vmul.f32 %v40, 0.8888889
    %v42 = vadd.f32 %v41, 0.011111111
    %v43 = vlaneseq
    %v44 = vshrl.u32 %v43, 7
    %s45 = smul.u32 0, 8
    %v46 = vstv %s45
    %v47 = vadd.s32 %v44, %v46
    %vm48 = vcmp.lt.s32.totalorder %v47, 8
    %v49 = vsel %vm48, 1, 0
    %v50 = vcvt.s32.f32 %v49
    %s51 = sld [smem:[#allocation2]]
    %v52 = vmul.f32 %v32, %v42
    %v53 = vmul.f32 %v52, %v50
    %v54 = vsel %vm20, %v53, 0.0
    %55 = vadd.xlane.f32.xlu0 %v54
    %v56 = vpop.xlane.xlu0 %55
    %v57 = vrot.slane %v56, 4
    %v58 = vadd.f32 %v56, %v57
    %v59 = vrot.slane %v58, 2
    %v60 = vadd.f32 %v58, %v59
    %v61 = vrot.slane %v60, 1
    %v62 = vadd.f32 %v60, %v61
    %s63 = vtos %v62
    %s64 = ssub.f32 0.0, %s63
    %s65 = sadd.f32 %s51, %s64
    %s66 = scalar_lea.smem [#allocation2], 0
    %67 = sst [smem:[%s66]] %s65
    // Predicated region
    $region14: #{tpu_custom_call.1} parent=1 // pred_check
      %p68 = pneg %p12
    $region15: #{tpu_custom_call.1} parent=1 // pred_check_branch
      %70 = sbr.rel (%p68) target = $region17
    $region16: #{tpu_custom_call.1} parent=1 // pred_region
      %s71 = sld [smem:[#allocation2]]
      %v72 = vrcp.pop 8.0
      %v73 = vmul.f32 8.0, %v72
      %v74 = vsub.f32 1.0, %v73
      %v75 = vmul.f32 %v72, %v74
      %v76 = vadd.f32 %v72, %v75
      %vm77 = vweird.f32 %v72
      %v78 = vsel %vm77, %v72, %v76
      %s79 = vtos %v78
      %s80 = smul.f32 %s71, %s79
      %s81 = scalar_lea.smem [#allocation3], 0
      %82 = sst [smem:[%s81]] %s80
    $region17: #{tpu_custom_call.1} parent=1 // pred_fallthru
      _
    // Predicated region
    $region18: #{tpu_custom_call.1} parent=1 // pred_check
      _
    $region19: #{tpu_custom_call.1} parent=1 // pred_check_branch
      %84 = sbr.rel (0) target = $region21
    $region20: #{tpu_custom_call.1} parent=1 // pred_region
      %86 = vsyncadd [#allocation4], 0
      %s88 = sshll.u32 %s2, 4
      %s89 = int_to_ptr.hbm [resolvable:$true] %s88
      %91 = dma.smem_to_hbm [#allocation3], 16, %s89, [#allocation4]
    $region21: #{tpu_custom_call.1} parent=1 // pred_fallthru
      _
    // Predicated region
    $region22: #{tpu_custom_call.1} parent=1 // pred_check
      _
    $region23: #{tpu_custom_call.1} parent=1 // pred_check_branch
      %93 = sbr.rel (0) target = $region25
    $region24: #{tpu_custom_call.1} parent=1 // pred_region
      %95 = dma.done [#allocation4], 16
    $region25: #{tpu_custom_call.1} parent=1 // pred_fallthru
      _
    %96 = sfence
    %97 = vsyncpa [#allocation4], 1

</llo_original>
